<compile_context>
chip_gen: v7x
topology: tpu7x:2x2x1
jax: 0.10.0
libtpu: 0.0.40
codegen_flags: <defaults>
</compile_context>

<pallas_src>
import functools

import jax
import jax.numpy as jnp
from jax.experimental import pallas as pl
from jax.experimental.pallas import tpu as pltpu

N_EMBD = 120
HIDDEN = 4 * N_EMBD  # 480


def _round_up(a, b):
    return (a + b - 1) // b * b


def _gelu_exact_f32(x):
    # torch.nn.GELU() default is the exact erf-based GELU; evaluate in f32.
    return 0.5 * x * (1.0 + jax.lax.erf(x * (1.0 / jnp.sqrt(2.0).astype(x.dtype))))


def _gelu_tanh_f32(x):
    # Optional tanh approximation (routes the transcendental through the EUP
    # slot).  Deviates ~1e-3 from torch's exact-erf default; off by default.
    c = jnp.float32(0.7978845608028654)  # sqrt(2/pi)
    return 0.5 * x * (1.0 + jnp.tanh(c * (x + 0.044715 * x * x * x)))


def ffn_kernel(x_ref, w1_ref, w2_ref, o_ref, *, approx_gelu):
    # x_ref : (tm, D)  f32, unpadded D; cast to bf16 in-register for the MXU
    # w1_ref: (D, Hp)  bf16, resident across the grid
    # w2_ref: (Hp, Dp) bf16, resident across the grid
    # o_ref : (tm, Dp) lane-dense output slab
    x_bf = x_ref[...].astype(jnp.bfloat16)
    h = jnp.dot(x_bf, w1_ref[...], preferred_element_type=jnp.float32)
    h = _gelu_tanh_f32(h) if approx_gelu else _gelu_exact_f32(h)
    y = jnp.dot(h.astype(jnp.bfloat16), w2_ref[...],
                preferred_element_type=jnp.float32)
    o_ref[...] = y.astype(o_ref.dtype)
    # TODO(synk): dropout with p=0 is the identity; no RNG path emitted.


def prepare_ffn_weights(w1, w2):
    """One-time (init-time) cast + pad of the static weights.

    w1: (n_embd, 4*n_embd) -> (n_embd, Hp) bf16  (hidden dim padded to 128)
    w2: (4*n_embd, n_embd) -> (Hp, Dp)     bf16  (both dims padded to 128)
    Zero padding is exact: padded hidden columns are GELU(0)=0 and the padded
    w2 rows are zero; padded output columns are zero and sliced off downstream.
    """
    D, H = w1.shape
    Hp = _round_up(H, 128)
    Dp = _round_up(D, 128)
    w1_p = jnp.zeros((D, Hp), jnp.bfloat16).at[:, :H].set(w1.astype(jnp.bfloat16))
    w2_p = jnp.zeros((Hp, Dp), jnp.bfloat16).at[:H, :D].set(w2.astype(jnp.bfloat16))
    return w1_p, w2_p


def feed_forward_padded(x2d, w1_p, w2_p, *, tm=1024, out_dtype=None,
                        approx_gelu=False):
    """Core kernel call. x2d: (M, n_embd) unpadded; returns an (M, Dp) slab."""
    M, D = x2d.shape
    assert w1_p.shape[0] == D, "w1_p must be prepared with prepare_ffn_weights"
    Hp = w1_p.shape[1]
    Dp = w2_p.shape[1]
    if out_dtype is None:
        out_dtype = x2d.dtype  # pass jnp.bfloat16 here to halve HBM writeback

    # Large row tile to amortize the ~0.35 us per-step overhead, but cap it at
    # ceil(M/2) rounded to 8 so grid_m >= 2 whenever M allows -- lets the
    # "parallel" row axis split across both TensorCores on megacore parts.
    tm = max(8, min(tm, _round_up(pl.cdiv(M, 2), 8)))
    grid_m = pl.cdiv(M, tm)  # ragged last block handled by Pallas (masked store)

    return pl.pallas_call(
        functools.partial(ffn_kernel, approx_gelu=approx_gelu),
        out_shape=jax.ShapeDtypeStruct((M, Dp), out_dtype),
        grid_spec=pltpu.PrefetchScalarGridSpec(
            num_scalar_prefetch=0,
            grid=(grid_m,),
            in_specs=[
                pl.BlockSpec((tm, D), lambda i: (i, 0)),    # x row tile (only per-step DMA)
                pl.BlockSpec((D, Hp), lambda i: (0, 0)),    # w1 resident across grid
                pl.BlockSpec((Hp, Dp), lambda i: (0, 0)),   # w2 resident across grid
            ],
            out_specs=pl.BlockSpec((tm, Dp), lambda i: (i, 0)),
        ),
        compiler_params=pltpu.CompilerParams(
            dimension_semantics=("parallel",),  # row axis shards across TCs
        ),
    )(x2d, w1_p, w2_p)


def feed_forward(x, w1_p, w2_p, *, tm=1024, out_dtype=None, approx_gelu=False):
    """x: (..., n_embd). w1_p/w2_p from prepare_ffn_weights(). Returns x.shape.

    Note: the trailing [:, :n_embd] slice costs an extra HBM read+write; a
    consumer that tolerates the 128-wide padded slab should call
    feed_forward_padded() directly.
    """
    orig_shape = x.shape
    D = orig_shape[-1]
    x2d = x.reshape(-1, D)
    out = feed_forward_padded(x2d, w1_p, w2_p, tm=tm, out_dtype=out_dtype,
                              approx_gelu=approx_gelu)
    return out[:, :D].reshape(orig_shape)


if __name__ == "__main__":
    key = jax.random.PRNGKey(0)
    kx, k1, k2 = jax.random.split(key, 3)

    B, T = 2, 8
    x = jax.random.normal(kx, (B, T, N_EMBD), dtype=jnp.float32)

    # Deterministic params, stored as (in, out); equivalent to torch Linear
    # weight.T with bias=False.
    w1 = jax.random.normal(k1, (N_EMBD, HIDDEN), dtype=jnp.float32) * 0.02
    w2 = jax.random.normal(k2, (HIDDEN, N_EMBD), dtype=jnp.float32) * 0.02

    # One-time weight prep (cast + pad) -- kept out of the per-call HBM path.
    w1_p, w2_p = prepare_ffn_weights(w1, w2)

    ffn = jax.jit(feed_forward)
    y = ffn(x, w1_p, w2_p)
    jax.block_until_ready(y)

    # Reference in plain f32 JAX (exact-erf GELU, matching torch defaults).
    # Tolerance widened because the kernel uses bf16 MXU operands (f32 acc).
    ref = jnp.einsum("btd,dh->bth", x, w1)
    ref = 0.5 * ref * (1.0 + jax.lax.erf(ref / jnp.sqrt(2.0)))
    ref = jnp.einsum("bth,hd->btd", ref, w2)
    assert y.shape == x.shape and y.dtype == x.dtype
    max_err = float(jnp.max(jnp.abs(y - ref)))
    assert jnp.allclose(y, ref, atol=2e-2, rtol=2e-2), (
        f"mismatch vs reference (max abs err {max_err})")

    print("KERNEL_OK")
</pallas_src>

<mosaic_0001>
module attributes {stable_mosaic.version = 11 : i64} {
  func.func @ffn_kernel(%arg0: i32, %arg1: memref<8x120xf32, #tpu.memory_space<vmem>>, %arg2: memref<120x512xbf16, #tpu.memory_space<vmem>>, %arg3: memref<512x128xbf16, #tpu.memory_space<vmem>>, %arg4: memref<8x128xf32, #tpu.memory_space<vmem>>) attributes {dimension_semantics = [#tpu.dimension_semantics<parallel>], iteration_bounds = array<i64: 2>, scalar_prefetch = 0 : i64, scratch_operands = 0 : i64, tpu.core_type = #tpu.core_type<tc>, window_params = [{transform_indices = @transform_0, window_bounds = array<i64: 8, 120>}, {pipeline_mode = #tpu.pipeline_mode<synchronous>, transform_indices = @transform_1, window_bounds = array<i64: 120, 512>}, {pipeline_mode = #tpu.pipeline_mode<synchronous>, transform_indices = @transform_2, window_bounds = array<i64: 512, 128>}, {transform_indices = @transform_3, window_bounds = array<i64: 8, 128>}]} {
    %c0 = arith.constant 0 : index
    %c0_0 = arith.constant 0 : index
    %0 = vector.load %arg1[%c0, %c0_0] : memref<8x120xf32, #tpu.memory_space<vmem>>, vector<8x120xf32>
    %1 = arith.truncf %0 : vector<8x120xf32> to vector<8x120xbf16>
    %c0_1 = arith.constant 0 : index
    %c0_2 = arith.constant 0 : index
    %2 = vector.load %arg2[%c0_1, %c0_2] : memref<120x512xbf16, #tpu.memory_space<vmem>>, vector<120x512xbf16>
    %cst = arith.constant dense<0.000000e+00> : vector<8x512xf32>
    %3 = tpu.matmul %1, %2, %cst {dimension_numbers = #tpu.dot_dimension_numbers<[1], [0], [0], [1], [0, 0, 1, 1], [], []>} : vector<8x120xbf16>, vector<120x512xbf16>, vector<8x512xf32> -> vector<8x512xf32>
    %cst_3 = arith.constant 5.000000e-01 : f32
    %4 = vector.broadcast %cst_3 : f32 to vector<8x512xf32>
    %5 = arith.mulf %4, %3 : vector<8x512xf32>
    %cst_4 = arith.constant 2.000000e+00 : f32
    %6 = math.sqrt %cst_4 : f32
    %cst_5 = arith.constant 1.000000e+00 : f32
    %7 = arith.divf %cst_5, %6 : f32
    %8 = vector.broadcast %7 : f32 to vector<8x512xf32>
    %9 = arith.mulf %3, %8 : vector<8x512xf32>
    %10 = math.erf %9 : vector<8x512xf32>
    %cst_6 = arith.constant 1.000000e+00 : f32
    %11 = vector.broadcast %cst_6 : f32 to vector<8x512xf32>
    %12 = arith.addf %11, %10 : vector<8x512xf32>
    %13 = arith.mulf %5, %12 : vector<8x512xf32>
    %14 = arith.truncf %13 : vector<8x512xf32> to vector<8x512xbf16>
    %c0_7 = arith.constant 0 : index
    %c0_8 = arith.constant 0 : index
    %15 = vector.load %arg3[%c0_7, %c0_8] : memref<512x128xbf16, #tpu.memory_space<vmem>>, vector<512x128xbf16>
    %cst_9 = arith.constant dense<0.000000e+00> : vector<8x128xf32>
    %16 = tpu.matmul %14, %15, %cst_9 {dimension_numbers = #tpu.dot_dimension_numbers<[1], [0], [0], [1], [0, 0, 1, 1], [], []>} : vector<8x512xbf16>, vector<512x128xbf16>, vector<8x128xf32> -> vector<8x128xf32>
    %c0_10 = arith.constant 0 : index
    %c0_11 = arith.constant 0 : index
    %17 = vector.load %arg4[%c0_10, %c0_11] : memref<8x128xf32, #tpu.memory_space<vmem>>, vector<8x128xf32>
    tpu.vector_store %arg4[%c0_10, %c0_11], %16 {strides = array<i32>} : memref<8x128xf32, #tpu.memory_space<vmem>>, vector<8x128xf32>,
    return
  }
  func.func @transform_0(%arg0: i32) -> (i32, i32) {
    %c0_i32 = arith.constant 0 : i32
    %c0_i32_0 = arith.constant 0 : i32
    return %arg0, %c0_i32 : i32, i32
  }
  func.func @transform_1(%arg0: i32) -> (i32, i32) {
    %c0_i32 = arith.constant 0 : i32
    %c0_i32_0 = arith.constant 0 : i32
    %c0_i32_1 = arith.constant 0 : i32
    return %c0_i32, %c0_i32_0 : i32, i32
  }
  func.func @transform_2(%arg0: i32) -> (i32, i32) {
    %c0_i32 = arith.constant 0 : i32
    %c0_i32_0 = arith.constant 0 : i32
    %c0_i32_1 = arith.constant 0 : i32
    return %c0_i32, %c0_i32_0 : i32, i32
  }
  func.func @transform_3(%arg0: i32) -> (i32, i32) {
    %c0_i32 = arith.constant 0 : i32
    %c0_i32_0 = arith.constant 0 : i32
    return %arg0, %c0_i32 : i32, i32
  }
}

</mosaic_0001>

<llo_original>
// kernel: feed_forward.1
$region0: #{feed_forward.1}
  #allocation0 [shape = 'u32[]', space=smem, size = 0x4, offset = 0x4, fixed_abs, tag = 'smem constant byte address 0x4 - core index']
  #allocation1 [shape = 'u32[144,128]{1,0:T(1,128)}', space=vmem, size = 0x12000, scoped, tag = 'internal scratch']
  %s0 = inlined_call_operand.hbm [shape: f32[16,120], index: 0, kind: input, shape index: {}]
  %s1 = inlined_call_operand.hbm [shape: bf16[120,512], index: 1, kind: input, shape index: {}]
  %s2 = inlined_call_operand.hbm [shape: bf16[512,128], index: 2, kind: input, shape index: {}]
  %s3 = inlined_call_operand.vmem [shape: f32[16,128], index: 3, kind: output, shape index: {}]
  %s4 = sld [smem:[#allocation0]]
  $region57: #{feed_forward.1} parent=0
    _
  %s6 = ssub.s32 1, %s4
  %s7 = scalar_select 0, %s6, %s4
  $region1: #{feed_forward.1} parent=0
    #allocation2 [shape = 'u8[8192]{0}', space=vmem, size = 0x2000, scoped, tag = 'input window, operand 0']
    #allocation3 [shape = 's32[2]{0}', space=sflag, size = 0x8, scoped, tag = 'scoped memory for feed_forward.1']
    #allocation4 [shape = 'u8[122880]{0}', space=vmem, size = 0x1e000, scoped, tag = 'input window, operand 1, single buffered']
    #allocation5 [shape = 's32[1]{0}', space=sflag, size = 0x4, scoped, tag = 'scoped memory for feed_forward.1']
    #allocation6 [shape = 'u8[131072]{0}', space=vmem, size = 0x20000, scoped, tag = 'input window, operand 2, single buffered']
    %8 = vsyncpa [#allocation3], 0
    %s9 = scalar_lea.sflag [#allocation3], 1
    %10 = vsyncpa %s9, 0
    %11 = vsyncpa [#allocation5], 0
    loop: start=0, step=1, limit=4
    $region2: #{feed_forward.1} parent=1 // loop_pre_header
      _
    $region3: #{feed_forward.1} parent=1 // loop_header
      %s13 = sphi 0, %s17
      %p14 = scmp.ge.s32.totalorder %s13, 4
      %s23 = sphi 0, %s25
      %s26 = sphi 0, %s23
      %s27 = sphi 0, %s26
      %s43 = sphi 0, %s27
      %s47 = sphi 0, %s47
      %s49 = sphi 0, %s47
      %s50 = sphi 0, %s49
      %s64 = sphi 0, %s50
      %s68 = sphi 0, %s68
      %s70 = sphi 0, %s68
      %s71 = sphi 0, %s70
      %s85 = sphi 0, %s71
      %s91 = sphi 0, %s93
      %s94 = sphi 0, %s91
      %s95 = sphi 0, %s94
      %s111 = sphi 0, %s95
    $region4: #{feed_forward.1} parent=1 // loop_header_branch
      %16 = sbr.rel (%p14) target = $region8
    $region5: #{feed_forward.1} parent=1 // loop_body
      %s18 = ssub.s32 %s13, 1
      %s19 = ssub.s32 %s13, 2
      %s20 = sadd.s32 %s13, 1
      %s21 = ssub.s32 %s13, %s20
      %p22 = scmp.eq.s32.totalorder %s21, 0
      %s24 = sadd.s32 %s23, 1
      %s25 = scalar_select %p22, %s23, %s24
      %p28 = pneg %p22
      %p29 = scmp.eq.s32.totalorder %s13, 1
      %p30 = por %p28, %p29
      %p31 = scmp.ne.s32.totalorder %s23, %s26
      %p32 = scmp.eq.s32.totalorder %s13, 0
      %p33 = por %p31, %p32
      %p34 = scmp.ne.s32.totalorder %s23, %s26
      %p35 = scmp.eq.s32.totalorder %s18, 1
      %p36 = por %p34, %p35
      %p37 = scmp.ne.s32.totalorder %s26, %s27
      %p38 = scmp.eq.s32.totalorder %s18, 0
      %p39 = por %p37, %p38
      %p40 = scmp.ne.s32.totalorder %s26, %s27
      %p41 = scmp.eq.s32.totalorder %s19, 1
      %p42 = por %p40, %p41
      %p44 = scmp.ne.s32.totalorder %s27, %s43
      %p45 = scmp.eq.s32.totalorder %s19, 0
      %p46 = por %p44, %p45
      %s48 = sadd.s32 %s47, 1
      %p51 = scmp.eq.s32.totalorder %s13, 1
      %p52 = scmp.ne.s32.totalorder %s47, %s49
      %p53 = scmp.eq.s32.totalorder %s13, 0
      %p54 = por %p52, %p53
      %p55 = scmp.ne.s32.totalorder %s47, %s49
      %p56 = scmp.eq.s32.totalorder %s18, 1
      %p57 = por %p55, %p56
      %p58 = scmp.ne.s32.totalorder %s49, %s50
      %p59 = scmp.eq.s32.totalorder %s18, 0
      %p60 = por %p58, %p59
      %p61 = scmp.ne.s32.totalorder %s49, %s50
      %p62 = scmp.eq.s32.totalorder %s19, 1
      %p63 = por %p61, %p62
      %p65 = scmp.ne.s32.totalorder %s50, %s64
      %p66 = scmp.eq.s32.totalorder %s19, 0
      %p67 = por %p65, %p66
      %s69 = sadd.s32 %s68, 1
      %p72 = scmp.eq.s32.totalorder %s13, 1
      %p73 = scmp.ne.s32.totalorder %s68, %s70
      %p74 = scmp.eq.s32.totalorder %s13, 0
      %p75 = por %p73, %p74
      %p76 = scmp.ne.s32.totalorder %s68, %s70
      %p77 = scmp.eq.s32.totalorder %s18, 1
      %p78 = por %p76, %p77
      %p79 = scmp.ne.s32.totalorder %s70, %s71
      %p80 = scmp.eq.s32.totalorder %s18, 0
      %p81 = por %p79, %p80
      %p82 = scmp.ne.s32.totalorder %s70, %s71
      %p83 = scmp.eq.s32.totalorder %s19, 1
      %p84 = por %p82, %p83
      %p86 = scmp.ne.s32.totalorder %s71, %s85
      %p87 = scmp.eq.s32.totalorder %s19, 0
      %p88 = por %p86, %p87
      %s89 = ssub.s32 %s13, %s20
      %p90 = scmp.eq.s32.totalorder %s89, 0
      %s92 = sadd.s32 %s91, 1
      %s93 = scalar_select %p90, %s91, %s92
      %p96 = pneg %p90
      %p97 = scmp.eq.s32.totalorder %s13, 1
      %p98 = por %p96, %p97
      %p99 = scmp.ne.s32.totalorder %s91, %s94
      %p100 = scmp.eq.s32.totalorder %s13, 0
      %p101 = por %p99, %p100
      %p102 = scmp.ne.s32.totalorder %s91, %s94
      %p103 = scmp.eq.s32.totalorder %s18, 1
      %p104 = por %p102, %p103
      %p105 = scmp.ne.s32.totalorder %s94, %s95
      %p106 = scmp.eq.s32.totalorder %s18, 0
      %p107 = por %p105, %p106
      %p108 = scmp.ne.s32.totalorder %s94, %s95
      %p109 = scmp.eq.s32.totalorder %s19, 1
      %p110 = por %p108, %p109
      %p112 = scmp.ne.s32.totalorder %s95, %s111
      %p113 = scmp.eq.s32.totalorder %s19, 0
      %p114 = por %p112, %p113
      %p115 = scmp.le.s32.totalorder 1, %s13
      %p116 = scmp.lt.s32.totalorder %s13, 3
      %p117 = pnand %p115, %p116
      %p118 = pneg %p117
      // Predicated region
      $region9: #{feed_forward.1} parent=5 // pred_check
        _
      $region10: #{feed_forward.1} parent=5 // pred_check_branch
        %120 = sbr.rel (%p117) target = $region12
      $region11: #{feed_forward.1} parent=5 // pred_region
        %s121 = ssub.s32 %s13, 1
        // Predicated region
        $region13: #{feed_forward.1} parent=11 // pred_check
          %p122 = pneg %p60
        $region14: #{feed_forward.1} parent=11 // pred_check_branch
          %124 = sbr.rel (%p122) target = $region16
        $region15: #{feed_forward.1} parent=11 // pred_region
          %s126 = ssub.s32 3840, 3840
          %127 = vsyncadd [#allocation5], %s126
          %s128 = sshll.u32 [#allocation4], 4
          %s129 = int_to_ptr.vmem [resolvable:$true] %s128
          %134 = dma.hbm_to_vmem [thread:$0]  %s1, 3840, %s129, [#allocation5], 256, 256, 16
        $region16: #{feed_forward.1} parent=11 // pred_fallthru
          _
        // Predicated region
        $region17: #{feed_forward.1} parent=11 // pred_check
          %p135 = pneg %p81
        $region18: #{feed_forward.1} parent=11 // pred_check_branch
          %137 = sbr.rel (%p135) target = $region20
        $region19: #{feed_forward.1} parent=11 // pred_region
          %s139 = ssub.s32 4096, 4096
          %140 = vsyncadd [#allocation5], %s139
          %s141 = sshll.u32 [#allocation6], 4
          %s142 = int_to_ptr.vmem [resolvable:$true] %s141
          %147 = dma.hbm_to_vmem [thread:$0]  %s2, 4096, %s142, [#allocation5], 64, 64, 4
        $region20: #{feed_forward.1} parent=11 // pred_fallthru
          _
      $region12: #{feed_forward.1} parent=5 // pred_fallthru
        _
      %p148 = scmp.lt.s32.totalorder %s13, 2
      // Predicated region
      $region21: #{feed_forward.1} parent=5 // pred_check
        %p149 = pneg %p148
      $region22: #{feed_forward.1} parent=5 // pred_check_branch
        %151 = sbr.rel (%p149) target = $region24
      $region23: #{feed_forward.1} parent=5 // pred_region
        // Predicated region
        $region25: #{feed_forward.1} parent=23 // pred_check
          %p152 = pneg %p33
        $region26: #{feed_forward.1} parent=23 // pred_check_branch
          %154 = sbr.rel (%p152) target = $region28
        $region27: #{feed_forward.1} parent=23 // pred_region
          %s155 = sand.u32 %s23, 1
          %s156 = scalar_lea.sflag [#allocation3], %s155
          %s157 = sand.u32 %s23, 1
          %s158 = smul.addr %s157, 8
          %s159 = scalar_lea.vmem [#allocation2], %s158
          %s161 = ssub.s32 128, 128
          %162 = vsyncadd %s156, %s161
          %s163 = smul.addr %s13, 128
          %s164 = scalar_lea.hbm %s0, %s163
          %s166 = sshll.u32 %s159, 4
          %s167 = int_to_ptr.vmem [resolvable:$true] %s166
          %169 = dma.hbm_to_vmem [thread:$0]  %s164, 128, %s167, %s156
        $region28: #{feed_forward.1} parent=23 // pred_fallthru
          _
      $region24: #{feed_forward.1} parent=5 // pred_fallthru
        _
      %p170 = scmp.le.s32.totalorder 1, %s13
      %p171 = scmp.lt.s32.totalorder %s13, 3
      %p172 = pnand %p170, %p171
      %p173 = pneg %p172
      // Predicated region
      $region29: #{feed_forward.1} parent=5 // pred_check
        _
      $region30: #{feed_forward.1} parent=5 // pred_check_branch
        %175 = sbr.rel (%p172) target = $region32
      $region31: #{feed_forward.1} parent=5 // pred_region
        %s176 = ssub.s32 %s13, 1
        %s177 = sand.u32 %s26, 1
        %s178 = scalar_lea.sflag [#allocation3], %s177
        %s179 = sand.u32 %s26, 1
        %s180 = smul.addr %s179, 8
        %s181 = scalar_lea.vmem [#allocation2], %s180
        // Predicated region
        $region33: #{feed_forward.1} parent=31 // pred_check
          %p182 = pneg %p39
        $region34: #{feed_forward.1} parent=31 // pred_check_branch
          %184 = sbr.rel (%p182) target = $region36
        $region35: #{feed_forward.1} parent=31 // pred_region
          %185 = dma.done %s178, 128
        $region36: #{feed_forward.1} parent=31 // pred_fallthru
          _
        // Predicated region
        $region37: #{feed_forward.1} parent=31 // pred_check
          %p186 = pneg %p60
        $region38: #{feed_forward.1} parent=31 // pred_check_branch
          %188 = sbr.rel (%p186) target = $region40
        $region39: #{feed_forward.1} parent=31 // pred_region
          %189 = dma.done [#allocation5], 3840
        $region40: #{feed_forward.1} parent=31 // pred_fallthru
          _
        // Predicated region
        $region41: #{feed_forward.1} parent=31 // pred_check
          %p190 = pneg %p81
        $region42: #{feed_forward.1} parent=31 // pred_check_branch
          %192 = sbr.rel (%p190) target = $region44
        $region43: #{feed_forward.1} parent=31 // pred_region
          %193 = dma.done [#allocation5], 4096
        $region44: #{feed_forward.1} parent=31 // pred_fallthru
          _
        %s194 = sand.u32 %s26, 1
        %s195 = scalar_lea.sflag [#allocation3], %s194
        %s196 = sand.u32 %s26, 1
        %s197 = smul.addr %s196, 8
        %s198 = scalar_lea.vmem [#allocation2], %s197
        %p199 = pneg %p39
        %p200 = pneg %p36
        %p201 = pneg %p60
        %p202 = pneg %p57
        %p203 = pneg %p81
        %p204 = pneg %p78
        %p205 = pneg %p107
        %p206 = pneg %p104
        %p207 = scmp.lt.s32.totalorder %s18, 1
        %s208 = scalar_select %p207, %s18, 1
        %s209 = smul.addr %s208, 8
        %s210 = scalar_lea.vmem %s3, %s209
        %p211 = scmp.lt.s32.totalorder %s18, 1
        %s212 = scalar_select %p211, %s18, 1
        %s213 = smul.addr %s212, 8
        %s214 = scalar_lea.vmem %s3, %s213
        %v216 = vld [vmem:[%s181] sm:$0xff]
        %v217 = vpack.c.bf16 %v216, %v216
        %v218 = vld [vmem:[#allocation4] sm:$0xff]
        %v219 = vld [vmem:[#allocation4 + $0x8] sm:$0xff]
        %v220 = vld [vmem:[#allocation4 + $0x10] sm:$0xff]
        %v221 = vld [vmem:[#allocation4 + $0x18] sm:$0xff]
        %v222 = vld [vmem:[#allocation4 + $0x20] sm:$0xff]
        %v223 = vld [vmem:[#allocation4 + $0x28] sm:$0xff]
        %v224 = vld [vmem:[#allocation4 + $0x30] sm:$0xff]
        %v225 = vld [vmem:[#allocation4 + $0x38] sm:$0xff]
        %v226 = vld [vmem:[#allocation4 + $0x40] sm:$0xff]
        %v227 = vld [vmem:[#allocation4 + $0x48] sm:$0xff]
        %v228 = vld [vmem:[#allocation4 + $0x50] sm:$0xff]
        %v229 = vld [vmem:[#allocation4 + $0x58] sm:$0xff]
        %v230 = vld [vmem:[#allocation4 + $0x60] sm:$0xff]
        %v231 = vld [vmem:[#allocation4 + $0x68] sm:$0xff]
        %v232 = vld [vmem:[#allocation4 + $0x70] sm:$0xff]
        %v233 = vld [vmem:[#allocation4 + $0x78] sm:$0xff]
        %v234 = vld [vmem:[#allocation4 + $0x80] sm:$0xff]
        %v235 = vld [vmem:[#allocation4 + $0x88] sm:$0xff]
        %v236 = vld [vmem:[#allocation4 + $0x90] sm:$0xff]
        %v237 = vld [vmem:[#allocation4 + $0x98] sm:$0xff]
        %v238 = vld [vmem:[#allocation4 + $0xa0] sm:$0xff]
        %v239 = vld [vmem:[#allocation4 + $0xa8] sm:$0xff]
        %v240 = vld [vmem:[#allocation4 + $0xb0] sm:$0xff]
        %v241 = vld [vmem:[#allocation4 + $0xb8] sm:$0xff]
        %v242 = vld [vmem:[#allocation4 + $0xc0] sm:$0xff]
        %v243 = vld [vmem:[#allocation4 + $0xc8] sm:$0xff]
        %v244 = vld [vmem:[#allocation4 + $0xd0] sm:$0xff]
        %v245 = vld [vmem:[#allocation4 + $0xd8] sm:$0xff]
        %v246 = vld [vmem:[#allocation4 + $0xe0] sm:$0xff]
        %v247 = vld [vmem:[#allocation4 + $0xe8] sm:$0xff]
        %v278 = vunpack.c.l.b16 %v218
        %v279 = vunpack.c.h.b16 %v218
        %v280 = vunpack.c.l.b16 %v219
        %v281 = vunpack.c.h.b16 %v219
        %v282 = vunpack.c.l.b16 %v220
        %v283 = vunpack.c.h.b16 %v220
        %v284 = vunpack.c.l.b16 %v221
        %v285 = vunpack.c.h.b16 %v221
        %v286 = vunpack.c.l.b16 %v222
        %v287 = vunpack.c.h.b16 %v222
        %v288 = vunpack.c.l.b16 %v223
        %v289 = vunpack.c.h.b16 %v223
        %v290 = vunpack.c.l.b16 %v224
        %v291 = vunpack.c.h.b16 %v224
        %v292 = vunpack.c.l.b16 %v225
        %v293 = vunpack.c.h.b16 %v225
        %v294 = vunpack.c.l.b16 %v226
        %v295 = vunpack.c.h.b16 %v226
        %v296 = vunpack.c.l.b16 %v227
        %v297 = vunpack.c.h.b16 %v227
        %v298 = vunpack.c.l.b16 %v228
        %v299 = vunpack.c.h.b16 %v228
        %v300 = vunpack.c.l.b16 %v229
        %v301 = vunpack.c.h.b16 %v229
        %v302 = vunpack.c.l.b16 %v230
        %v303 = vunpack.c.h.b16 %v230
        %v304 = vunpack.c.l.b16 %v231
        %v305 = vunpack.c.h.b16 %v231
        %v306 = vunpack.c.l.b16 %v232
        %v307 = vunpack.c.h.b16 %v232
        %v308 = vunpack.c.l.b16 %v233
        %v309 = vunpack.c.h.b16 %v233
        %v310 = vunpack.c.l.b16 %v234
        %v311 = vunpack.c.h.b16 %v234
        %v312 = vunpack.c.l.b16 %v235
        %v313 = vunpack.c.h.b16 %v235
        %v314 = vunpack.c.l.b16 %v236
        %v315 = vunpack.c.h.b16 %v236
        %v316 = vunpack.c.l.b16 %v237
        %v317 = vunpack.c.h.b16 %v237
        %v318 = vunpack.c.l.b16 %v238
        %v319 = vunpack.c.h.b16 %v238
        %v320 = vunpack.c.l.b16 %v239
        %v321 = vunpack.c.h.b16 %v239
        %v322 = vunpack.c.l.b16 %v240
        %v323 = vunpack.c.h.b16 %v240
        %v324 = vunpack.c.l.b16 %v241
        %v325 = vunpack.c.h.b16 %v241
        %v326 = vunpack.c.l.b16 %v242
        %v327 = vunpack.c.h.b16 %v242
        %v328 = vunpack.c.l.b16 %v243
        %v329 = vunpack.c.h.b16 %v243
        %v330 = vunpack.c.l.b16 %v244
        %v331 = vunpack.c.h.b16 %v244
        %v332 = vunpack.c.l.b16 %v245
        %v333 = vunpack.c.h.b16 %v245
        %v334 = vunpack.c.l.b16 %v246
        %v335 = vunpack.c.h.b16 %v246
        %v336 = vunpack.c.l.b16 %v247
        %v337 = vunpack.c.h.b16 %v247
        %v338 = vpack.c.b16 %v282, %v278
        %v339 = vpack.c.b16 %v283, %v279
        %v340 = vpack.c.b16 %v284, %v280
        %v341 = vpack.c.b16 %v285, %v281
        %v342 = vpack.c.b16 %v290, %v286
        %v343 = vpack.c.b16 %v291, %v287
        %v344 = vpack.c.b16 %v292, %v288
        %v345 = vpack.c.b16 %v293, %v289
        %v346 = vpack.c.b16 %v298, %v294
        %v347 = vpack.c.b16 %v299, %v295
        %v348 = vpack.c.b16 %v300, %v296
        %v349 = vpack.c.b16 %v301, %v297
        %v350 = vpack.c.b16 %v306, %v302
        %v351 = vpack.c.b16 %v307, %v303
        %v352 = vpack.c.b16 %v308, %v304
        %v353 = vpack.c.b16 %v309, %v305
        %v354 = vpack.c.b16 %v314, %v310
        %v355 = vpack.c.b16 %v315, %v311
        %v356 = vpack.c.b16 %v316, %v312
        %v357 = vpack.c.b16 %v317, %v313
        %v358 = vpack.c.b16 %v322, %v318
        %v359 = vpack.c.b16 %v323, %v319
        %v360 = vpack.c.b16 %v324, %v320
        %v361 = vpack.c.b16 %v325, %v321
        %v362 = vpack.c.b16 %v330, %v326
        %v363 = vpack.c.b16 %v331, %v327
        %v364 = vpack.c.b16 %v332, %v328
        %v365 = vpack.c.b16 %v333, %v329
        %v366 = vpack.c.b16 %v334, %v334
        %v367 = vpack.c.b16 %v335, %v335
        %v368 = vpack.c.b16 %v336, %v336
        %v369 = vpack.c.b16 %v337, %v337
        %vm398 = vcmask 982016
        %v400 = vsel %vm398, %v217, 0
        %vm402 = vcmask 1043456
        %v404 = vsel %vm402, %v366, 0
        %v407 = vsel %vm402, %v367, 0
        %v410 = vsel %vm402, %v368, 0
        %v413 = vsel %vm402, %v369, 0
        %415 = vmatprep.subr.bf16.mxu0 %v339
        %416 = vmatpush1.bf16.msra.mxu0 %v338
        %417 = vmatprep.subr.bf16.mxu0 %v343
        %418 = vmatpush1.bf16.msra.mxu0 %v342
        %419 = vmatprep.subr.bf16.mxu0 %v347
        %420 = vmatpush1.bf16.msra.mxu0 %v346
        %421 = vmatprep.subr.bf16.mxu0 %v351
        %422 = vmatpush1.bf16.msra.mxu0 %v350
        %423 = vmatprep.subr.bf16.mxu0 %v355
        %424 = vmatpush1.bf16.msra.mxu0 %v354
        %425 = vmatprep.subr.bf16.mxu0 %v359
        %426 = vmatpush1.bf16.msra.mxu0 %v358
        %427 = vmatprep.subr.bf16.mxu0 %v363
        %428 = vmatpush1.bf16.msra.mxu0 %v362
        %429 = vmatprep.subr.bf16.mxu0 %v407
        %430 = vmatpush1.bf16.msra.mxu0 %v404
        %431 = vmatprep.subr.bf16.mxu0 0
        %432 = vmatpush1.bf16.msra.mxu0 0
        %433 = vmatprep.subr.bf16.mxu0 0
        %434 = vmatpush1.bf16.msra.mxu0 0
        %435 = vmatprep.subr.bf16.mxu0 0
        %436 = vmatpush1.bf16.msra.mxu0 0
        %437 = vmatprep.subr.bf16.mxu0 0
        %438 = vmatpush1.bf16.msra.mxu0 0
        %439 = vmatprep.subr.bf16.mxu0 0
        %440 = vmatpush1.bf16.msra.mxu0 0
        %441 = vmatprep.subr.bf16.mxu0 0
        %442 = vmatpush1.bf16.msra.mxu0 0
        %443 = vmatprep.subr.bf16.mxu0 0
        %444 = vmatpush1.bf16.msra.mxu0 0
        %445 = vmatprep.subr.bf16.mxu0 0
        %446 = vmatpush1.bf16.msra.mxu0 0
        %447 = vmatprep.mubr.bf16.mxu0 0
        %448 = vmatmul.mubr.bf16.gmra.mrb[0].mxu0 %v400
        %v449 = vpop.f32.mrb[0].mxu0
        %v450 = vadd.f32 0.0, %v449
        %v451 = vpop.f32.mrb[0].mxu0
        %v452 = vadd.f32 0.0, %v451
        %v453 = vpop.f32.mrb[0].mxu0
        %v454 = vpop.f32.mrb[0].mxu0
        %455 = vdwg.mxu0
        %456 = vmatprep.subr.bf16.mxu0 %v341
        %457 = vmatpush1.bf16.msra.mxu0 %v340
        %458 = vmatprep.subr.bf16.mxu0 %v345
        %459 = vmatpush1.bf16.msra.mxu0 %v344
        %460 = vmatprep.subr.bf16.mxu0 %v349
        %461 = vmatpush1.bf16.msra.mxu0 %v348
        %462 = vmatprep.subr.bf16.mxu0 %v353
        %463 = vmatpush1.bf16.msra.mxu0 %v352
        %464 = vmatprep.subr.bf16.mxu0 %v357
        %465 = vmatpush1.bf16.msra.mxu0 %v356
        %466 = vmatprep.subr.bf16.mxu0 %v361
        %467 = vmatpush1.bf16.msra.mxu0 %v360
        %468 = vmatprep.subr.bf16.mxu0 %v365
        %469 = vmatpush1.bf16.msra.mxu0 %v364
        %470 = vmatprep.subr.bf16.mxu0 %v413
        %471 = vmatpush1.bf16.msra.mxu0 %v410
        %472 = vmatprep.subr.bf16.mxu0 0
        %473 = vmatpush1.bf16.msra.mxu0 0
        %474 = vmatprep.subr.bf16.mxu0 0
        %475 = vmatpush1.bf16.msra.mxu0 0
        %476 = vmatprep.subr.bf16.mxu0 0
        %477 = vmatpush1.bf16.msra.mxu0 0
        %478 = vmatprep.subr.bf16.mxu0 0
        %479 = vmatpush1.bf16.msra.mxu0 0
        %480 = vmatprep.subr.bf16.mxu0 0
        %481 = vmatpush1.bf16.msra.mxu0 0
        %482 = vmatprep.subr.bf16.mxu0 0
        %483 = vmatpush1.bf16.msra.mxu0 0
        %484 = vmatprep.subr.bf16.mxu0 0
        %485 = vmatpush1.bf16.msra.mxu0 0
        %486 = vmatprep.subr.bf16.mxu0 0
        %487 = vmatpush1.bf16.msra.mxu0 0
        %488 = vmatprep.mubr.bf16.mxu0 0
        %489 = vmatmul.mubr.bf16.gmra.mrb[0].mxu0 %v400
        %v490 = vpop.f32.mrb[0].mxu0
        %v491 = vadd.f32 0.0, %v490
        %v492 = vpop.f32.mrb[0].mxu0
        %v493 = vadd.f32 0.0, %v492
        %v494 = vpop.f32.mrb[0].mxu0
        %v495 = vpop.f32.mrb[0].mxu0
        %496 = vdwg.mxu0
        %v497 = vmul.f32 %v450, 0.5
        %v498 = vmul.f32 %v452, 0.5
        %v499 = vmul.f32 %v491, 0.5
        %v500 = vmul.f32 %v493, 0.5
        %v501 = vmul.f32 %v450, 0.70710677
        %v502 = vmul.f32 %v452, 0.70710677
        %v503 = vmul.f32 %v491, 0.70710677
        %v504 = vmul.f32 %v493, 0.70710677
        %v505 = verf.f32.pop %v501
        %v506 = verf.f32.pop %v502
        %v507 = verf.f32.pop %v503
        %v508 = verf.f32.pop %v504
        %v509 = vadd.f32 %v505, 1.0
        %v510 = vadd.f32 %v506, 1.0
        %v511 = vadd.f32 %v507, 1.0
        %v512 = vadd.f32 %v508, 1.0
        %v513 = vmul.f32 %v497, %v509
        %v514 = vmul.f32 %v498, %v510
        %v515 = vmul.f32 %v499, %v511
        %v516 = vmul.f32 %v500, %v512
        %v517 = vpack.c.bf16 %v513, %v513
        %v518 = vpack.c.bf16 %v514, %v514
        %v519 = vpack.c.bf16 %v515, %v515
        %v520 = vpack.c.bf16 %v516, %v516
        %v521 = vld [vmem:[#allocation6] sm:$0xf]
        %v522 = vld [vmem:[#allocation6 + $0x4] sm:$0xf]
        %v523 = vld [vmem:[#allocation6 + $0x8] sm:$0xf]
        %v524 = vld [vmem:[#allocation6 + $0xc] sm:$0xf]
        %v525 = vld [vmem:[#allocation6 + $0x10] sm:$0xf]
        %v526 = vld [vmem:[#allocation6 + $0x14] sm:$0xf]
        %v527 = vld [vmem:[#allocation6 + $0x18] sm:$0xf]
        %v528 = vld [vmem:[#allocation6 + $0x1c] sm:$0xf]
        %v529 = vld [vmem:[#allocation6 + $0x20] sm:$0xf]
        %v530 = vld [vmem:[#allocation6 + $0x24] sm:$0xf]
        %v531 = vld [vmem:[#allocation6 + $0x28] sm:$0xf]
        %v532 = vld [vmem:[#allocation6 + $0x2c] sm:$0xf]
        %v533 = vld [vmem:[#allocation6 + $0x30] sm:$0xf]
        %v534 = vld [vmem:[#allocation6 + $0x34] sm:$0xf]
        %v535 = vld [vmem:[#allocation6 + $0x38] sm:$0xf]
        %v536 = vld [vmem:[#allocation6 + $0x3c] sm:$0xf]
        %v537 = vld [vmem:[#allocation6 + $0x40] sm:$0xf]
        %v538 = vld [vmem:[#allocation6 + $0x44] sm:$0xf]
        %v539 = vld [vmem:[#allocation6 + $0x48] sm:$0xf]
        %v540 = vld [vmem:[#allocation6 + $0x4c] sm:$0xf]
        %v541 = vld [vmem:[#allocation6 + $0x50] sm:$0xf]
        %v542 = vld [vmem:[#allocation6 + $0x54] sm:$0xf]
        %v543 = vld [vmem:[#allocation6 + $0x58] sm:$0xf]
        %v544 = vld [vmem:[#allocation6 + $0x5c] sm:$0xf]
        %v545 = vld [vmem:[#allocation6 + $0x60] sm:$0xf]
        %v546 = vld [vmem:[#allocation6 + $0x64] sm:$0xf]
        %v547 = vld [vmem:[#allocation6 + $0x68] sm:$0xf]
        %v548 = vld [vmem:[#allocation6 + $0x6c] sm:$0xf]
        %v549 = vld [vmem:[#allocation6 + $0x70] sm:$0xf]
        %v550 = vld [vmem:[#allocation6 + $0x74] sm:$0xf]
        %v551 = vld [vmem:[#allocation6 + $0x78] sm:$0xf]
        %v552 = vld [vmem:[#allocation6 + $0x7c] sm:$0xf]
        %v553 = vld [vmem:[#allocation6 + $0x80] sm:$0xf]
        %v554 = vld [vmem:[#allocation6 + $0x84] sm:$0xf]
        %v555 = vld [vmem:[#allocation6 + $0x88] sm:$0xf]
        %v556 = vld [vmem:[#allocation6 + $0x8c] sm:$0xf]
        %v557 = vld [vmem:[#allocation6 + $0x90] sm:$0xf]
        %v558 = vld [vmem:[#allocation6 + $0x94] sm:$0xf]
        %v559 = vld [vmem:[#allocation6 + $0x98] sm:$0xf]
        %v560 = vld [vmem:[#allocation6 + $0x9c] sm:$0xf]
        %v561 = vld [vmem:[#allocation6 + $0xa0] sm:$0xf]
        %v562 = vld [vmem:[#allocation6 + $0xa4] sm:$0xf]
        %v563 = vld [vmem:[#allocation6 + $0xa8] sm:$0xf]
        %v564 = vld [vmem:[#allocation6 + $0xac] sm:$0xf]
        %v565 = vld [vmem:[#allocation6 + $0xb0] sm:$0xf]
        %v566 = vld [vmem:[#allocation6 + $0xb4] sm:$0xf]
        %v567 = vld [vmem:[#allocation6 + $0xb8] sm:$0xf]
        %v568 = vld [vmem:[#allocation6 + $0xbc] sm:$0xf]
        %v569 = vld [vmem:[#allocation6 + $0xc0] sm:$0xf]
        %v570 = vld [vmem:[#allocation6 + $0xc4] sm:$0xf]
        %v571 = vld [vmem:[#allocation6 + $0xc8] sm:$0xf]
        %v572 = vld [vmem:[#allocation6 + $0xcc] sm:$0xf]
        %v573 = vld [vmem:[#allocation6 + $0xd0] sm:$0xf]
        %v574 = vld [vmem:[#allocation6 + $0xd4] sm:$0xf]
        %v575 = vld [vmem:[#allocation6 + $0xd8] sm:$0xf]
        %v576 = vld [vmem:[#allocation6 + $0xdc] sm:$0xf]
        %v577 = vld [vmem:[#allocation6 + $0xe0] sm:$0xf]
        %v578 = vld [vmem:[#allocation6 + $0xe4] sm:$0xf]
        %v579 = vld [vmem:[#allocation6 + $0xe8] sm:$0xf]
        %v580 = vld [vmem:[#allocation6 + $0xec] sm:$0xf]
        %v581 = vld [vmem:[#allocation6 + $0xf0] sm:$0xf]
        %v582 = vld [vmem:[#allocation6 + $0xf4] sm:$0xf]
        %v583 = vld [vmem:[#allocation6 + $0xf8] sm:$0xf]
        %v584 = vld [vmem:[#allocation6 + $0xfc] sm:$0xf]
        %v649 = vunpack.c.l.b16 %v521
        %v650 = vunpack.c.l.b16 %v522
        %v651 = vunpack.c.l.b16 %v523
        %v652 = vunpack.c.l.b16 %v524
        %v653 = vunpack.c.l.b16 %v525
        %v654 = vunpack.c.l.b16 %v526
        %v655 = vunpack.c.l.b16 %v527
        %v656 = vunpack.c.l.b16 %v528
        %v657 = vunpack.c.l.b16 %v529
        %v658 = vunpack.c.l.b16 %v530
        %v659 = vunpack.c.l.b16 %v531
        %v660 = vunpack.c.l.b16 %v532
        %v661 = vunpack.c.l.b16 %v533
        %v662 = vunpack.c.l.b16 %v534
        %v663 = vunpack.c.l.b16 %v535
        %v664 = vunpack.c.l.b16 %v536
        %v665 = vunpack.c.l.b16 %v537
        %v666 = vunpack.c.l.b16 %v538
        %v667 = vunpack.c.l.b16 %v539
        %v668 = vunpack.c.l.b16 %v540
        %v669 = vunpack.c.l.b16 %v541
        %v670 = vunpack.c.l.b16 %v542
        %v671 = vunpack.c.l.b16 %v543
        %v672 = vunpack.c.l.b16 %v544
        %v673 = vunpack.c.l.b16 %v545
        %v674 = vunpack.c.l.b16 %v546
        %v675 = vunpack.c.l.b16 %v547
        %v676 = vunpack.c.l.b16 %v548
        %v677 = vunpack.c.l.b16 %v549
        %v678 = vunpack.c.l.b16 %v550
        %v679 = vunpack.c.l.b16 %v551
        %v680 = vunpack.c.l.b16 %v552
        %v681 = vunpack.c.l.b16 %v553
        %v682 = vunpack.c.l.b16 %v554
        %v683 = vunpack.c.l.b16 %v555
        %v684 = vunpack.c.l.b16 %v556
        %v685 = vunpack.c.l.b16 %v557
        %v686 = vunpack.c.l.b16 %v558
        %v687 = vunpack.c.l.b16 %v559
        %v688 = vunpack.c.l.b16 %v560
        %v689 = vunpack.c.l.b16 %v561
        %v690 = vunpack.c.l.b16 %v562
        %v691 = vunpack.c.l.b16 %v563
        %v692 = vunpack.c.l.b16 %v564
        %v693 = vunpack.c.l.b16 %v565
        %v694 = vunpack.c.l.b16 %v566
        %v695 = vunpack.c.l.b16 %v567
        %v696 = vunpack.c.l.b16 %v568
        %v697 = vunpack.c.l.b16 %v569
        %v698 = vunpack.c.l.b16 %v570
        %v699 = vunpack.c.l.b16 %v571
        %v700 = vunpack.c.l.b16 %v572
        %v701 = vunpack.c.l.b16 %v573
        %v702 = vunpack.c.l.b16 %v574
        %v703 = vunpack.c.l.b16 %v575
        %v704 = vunpack.c.l.b16 %v576
        %v705 = vunpack.c.l.b16 %v577
        %v706 = vunpack.c.l.b16 %v578
        %v707 = vunpack.c.l.b16 %v579
        %v708 = vunpack.c.l.b16 %v580
        %v709 = vunpack.c.l.b16 %v581
        %v710 = vunpack.c.l.b16 %v582
        %v711 = vunpack.c.l.b16 %v583
        %v712 = vunpack.c.l.b16 %v584
        %v713 = vpack.c.b16 %v650, %v649
        %v714 = vpack.c.b16 %v652, %v651
        %v715 = vpack.c.b16 %v654, %v653
        %v716 = vpack.c.b16 %v656, %v655
        %v717 = vpack.c.b16 %v658, %v657
        %v718 = vpack.c.b16 %v660, %v659
        %v719 = vpack.c.b16 %v662, %v661
        %v720 = vpack.c.b16 %v664, %v663
        %v721 = vpack.c.b16 %v666, %v665
        %v722 = vpack.c.b16 %v668, %v667
        %v723 = vpack.c.b16 %v670, %v669
        %v724 = vpack.c.b16 %v672, %v671
        %v725 = vpack.c.b16 %v674, %v673
        %v726 = vpack.c.b16 %v676, %v675
        %v727 = vpack.c.b16 %v678, %v677
        %v728 = vpack.c.b16 %v680, %v679
        %v729 = vpack.c.b16 %v682, %v681
        %v730 = vpack.c.b16 %v684, %v683
        %v731 = vpack.c.b16 %v686, %v685
        %v732 = vpack.c.b16 %v688, %v687
        %v733 = vpack.c.b16 %v690, %v689
        %v734 = vpack.c.b16 %v692, %v691
        %v735 = vpack.c.b16 %v694, %v693
        %v736 = vpack.c.b16 %v696, %v695
        %v737 = vpack.c.b16 %v698, %v697
        %v738 = vpack.c.b16 %v700, %v699
        %v739 = vpack.c.b16 %v702, %v701
        %v740 = vpack.c.b16 %v704, %v703
        %v741 = vpack.c.b16 %v706, %v705
        %v742 = vpack.c.b16 %v708, %v707
        %v743 = vpack.c.b16 %v710, %v709
        %v744 = vpack.c.b16 %v712, %v711
        %777 = vmatprep.subr.bf16.mxu0 0
        %778 = vmatpush1.bf16.msra.mxu0 %v713
        %779 = vmatprep.subr.bf16.mxu0 0
        %780 = vmatpush1.bf16.msra.mxu0 %v714
        %781 = vmatprep.subr.bf16.mxu0 0
        %782 = vmatpush1.bf16.msra.mxu0 %v715
        %783 = vmatprep.subr.bf16.mxu0 0
        %784 = vmatpush1.bf16.msra.mxu0 %v716
        %785 = vmatprep.subr.bf16.mxu0 0
        %786 = vmatpush1.bf16.msra.mxu0 %v717
        %787 = vmatprep.subr.bf16.mxu0 0
        %788 = vmatpush1.bf16.msra.mxu0 %v718
        %789 = vmatprep.subr.bf16.mxu0 0
        %790 = vmatpush1.bf16.msra.mxu0 %v719
        %791 = vmatprep.subr.bf16.mxu0 0
        %792 = vmatpush1.bf16.msra.mxu0 %v720
        %793 = vmatprep.subr.bf16.mxu0 0
        %794 = vmatpush1.bf16.msra.mxu0 %v721
        %795 = vmatprep.subr.bf16.mxu0 0
        %796 = vmatpush1.bf16.msra.mxu0 %v722
        %797 = vmatprep.subr.bf16.mxu0 0
        %798 = vmatpush1.bf16.msra.mxu0 %v723
        %799 = vmatprep.subr.bf16.mxu0 0
        %800 = vmatpush1.bf16.msra.mxu0 %v724
        %801 = vmatprep.subr.bf16.mxu0 0
        %802 = vmatpush1.bf16.msra.mxu0 %v725
        %803 = vmatprep.subr.bf16.mxu0 0
        %804 = vmatpush1.bf16.msra.mxu0 %v726
        %805 = vmatprep.subr.bf16.mxu0 0
        %806 = vmatpush1.bf16.msra.mxu0 %v727
        %807 = vmatprep.subr.bf16.mxu0 0
        %808 = vmatpush1.bf16.msra.mxu0 %v728
        %809 = vmatprep.mubr.bf16.mxu0 %v518
        %810 = vmatmul.mubr.bf16.gmra.mrb[0].mxu0 %v517
        %v811 = vpop.f32.mrb[0].mxu0
        %v812 = vadd.f32 0.0, %v811
        %v813 = vpop.f32.mrb[0].mxu0
        %v814 = vpop.f32.mrb[0].mxu0
        %v815 = vpop.f32.mrb[0].mxu0
        %816 = vdwg.mxu0
        %817 = vmatprep.subr.bf16.mxu0 0
        %818 = vmatpush1.bf16.msra.mxu0 %v729
        %819 = vmatprep.subr.bf16.mxu0 0
        %820 = vmatpush1.bf16.msra.mxu0 %v730
        %821 = vmatprep.subr.bf16.mxu0 0
        %822 = vmatpush1.bf16.msra.mxu0 %v731
        %823 = vmatprep.subr.bf16.mxu0 0
        %824 = vmatpush1.bf16.msra.mxu0 %v732
        %825 = vmatprep.subr.bf16.mxu0 0
        %826 = vmatpush1.bf16.msra.mxu0 %v733
        %827 = vmatprep.subr.bf16.mxu0 0
        %828 = vmatpush1.bf16.msra.mxu0 %v734
        %829 = vmatprep.subr.bf16.mxu0 0
        %830 = vmatpush1.bf16.msra.mxu0 %v735
        %831 = vmatprep.subr.bf16.mxu0 0
        %832 = vmatpush1.bf16.msra.mxu0 %v736
        %833 = vmatprep.subr.bf16.mxu0 0
        %834 = vmatpush1.bf16.msra.mxu0 %v737
        %835 = vmatprep.subr.bf16.mxu0 0
        %836 = vmatpush1.bf16.msra.mxu0 %v738
        %837 = vmatprep.subr.bf16.mxu0 0
        %838 = vmatpush1.bf16.msra.mxu0 %v739
        %839 = vmatprep.subr.bf16.mxu0 0
        %840 = vmatpush1.bf16.msra.mxu0 %v740
        %841 = vmatprep.subr.bf16.mxu0 0
        %842 = vmatpush1.bf16.msra.mxu0 %v741
        %843 = vmatprep.subr.bf16.mxu0 0
        %844 = vmatpush1.bf16.msra.mxu0 %v742
        %845 = vmatprep.subr.bf16.mxu0 0
        %846 = vmatpush1.bf16.msra.mxu0 %v743
        %847 = vmatprep.subr.bf16.mxu0 0
        %848 = vmatpush1.bf16.msra.mxu0 %v744
        %849 = vmatprep.mubr.bf16.mxu0 %v520
        %850 = vmatmul.mubr.bf16.gmra.mrb[0].mxu0 %v519
        %v851 = vpop.f32.mrb[0].mxu0
        %v852 = vadd.f32 %v812, %v851
        %v853 = vpop.f32.mrb[0].mxu0
        %v854 = vpop.f32.mrb[0].mxu0
        %v855 = vpop.f32.mrb[0].mxu0
        %856 = vdwg.mxu0
        %857 = vst [vmem:[%s214] sm:$0xff] %v852
        %p858 = scmp.lt.s32.totalorder %s18, 1
        %s859 = scalar_select %p858, %s18, 1
        %s860 = smul.addr %s859, 8
        %s861 = scalar_lea.vmem %s3, %s860
        // Predicated region
        $region45: #{feed_forward.1} parent=31 // pred_check
          %p862 = pneg %p104
        $region46: #{feed_forward.1} parent=31 // pred_check_branch
          %864 = sbr.rel (%p862) target = $region48
        $region47: #{feed_forward.1} parent=31 // pred_region
          _
        $region48: #{feed_forward.1} parent=31 // pred_fallthru
          _
      $region32: #{feed_forward.1} parent=5 // pred_fallthru
        _
      %p865 = scmp.le.s32.totalorder 2, %s13
      // Predicated region
      $region49: #{feed_forward.1} parent=5 // pred_check
        %p866 = pneg %p865
      $region50: #{feed_forward.1} parent=5 // pred_check_branch
        %868 = sbr.rel (%p866) target = $region52
      $region51: #{feed_forward.1} parent=5 // pred_region
        %s869 = ssub.s32 %s13, 2
        // Predicated region
        $region53: #{feed_forward.1} parent=51 // pred_check
          %p870 = pneg %p110
        $region54: #{feed_forward.1} parent=51 // pred_check_branch
          %872 = sbr.rel (%p870) target = $region56
        $region55: #{feed_forward.1} parent=51 // pred_region
          %p873 = scmp.lt.s32.totalorder %s19, 1
          %s874 = scalar_select %p873, %s19, 1
          %s875 = smul.addr %s874, 8
          %s876 = scalar_lea.vmem %s3, %s875
        $region56: #{feed_forward.1} parent=51 // pred_fallthru
          _
      $region52: #{feed_forward.1} parent=5 // pred_fallthru
        _
    $region6: #{feed_forward.1} parent=1 // loop_footer
      %s17 = sadd.s32 1, %s13
    $region7: #{feed_forward.1} parent=1 // loop_footer_branch
      %12 = sbr.rel target = $region3
    $region8: #{feed_forward.1} parent=1 // loop_exit
      _
    %877 = vsyncpa [#allocation3], 1
    %s878 = scalar_lea.sflag [#allocation3], 1
    %879 = vsyncpa %s878, 1
    %880 = vsyncpa [#allocation5], 1

</llo_original>
